<compile_context>
chip_gen: v7x
topology: tpu7x:2x2x1
jax: 0.10.0
libtpu: 0.0.40
codegen_flags: <defaults>
</compile_context>

<pallas_src>
import functools

import jax
import jax.numpy as jnp
from jax import lax
from jax.experimental import pallas as pl
from jax.experimental.pallas import tpu as pltpu


def _round_up(x, m):
    return ((x + m - 1) // m) * m


def complex_kernel(act_a_ref, act_b_ref, wr_ref, wi_ref, out_ref):
    """Score the full batch against one (tile_n, D) slab of entities.

    act_a = er*rr - ei*ri   (B, D)  -> contracts with emb_e_real rows
    act_b = er*ri + ei*rr   (B, D)  -> contracts with emb_e_img  rows
    wr/wi = row-major (tile_n, D) tiles of the entity tables.
    """
    dn = (((1,), (1,)), ((), ()))  # contract D of (B,D) with D of (tile_n,D)
    s = lax.dot_general(act_a_ref[...], wr_ref[...], dn,
                        preferred_element_type=jnp.float32)
    s += lax.dot_general(act_b_ref[...], wi_ref[...], dn,
                         preferred_element_type=jnp.float32)
    out_ref[...] = jax.nn.sigmoid(s).astype(out_ref.dtype)


@functools.partial(jax.jit, static_argnames=("tile_n",))
def complex_forward(e1, rel, emb_e_real, emb_e_img,
                    emb_rel_real, emb_rel_img, *, tile_n=512):
    """Embedding gathers + fused VPU interaction terms in JAX; scoring in Pallas."""
    B = e1.shape[0]
    N, D = emb_e_real.shape
    f32 = jnp.float32

    # torch.nn.Embedding lookups (+ .squeeze()); dropout is identity in eval.
    e1r = emb_e_real[e1].astype(f32)      # (B, D)
    e1i = emb_e_img[e1].astype(f32)       # (B, D)
    rr = emb_rel_real[rel].astype(f32)    # (B, D)
    ri = emb_rel_img[rel].astype(f32)     # (B, D)

    # Complex-arithmetic identity: hoist the grid-invariant elementwise work,
    # halving the number of MXU matmuls inside the kernel.
    act_a = e1r * rr - e1i * ri           # (B, D)
    act_b = e1r * ri + e1i * rr           # (B, D)

    # Tile the entity axis; pad the tail so every grid step is a full tile
    # (padded rows are zeros -> their scores are sliced away afterwards).
    tile = min(tile_n, _round_up(N, 128))
    n_pad = _round_up(N, tile)
    if n_pad != N:
        pad = ((0, n_pad - N), (0, 0))
        wr = jnp.pad(emb_e_real.astype(f32), pad)
        wi = jnp.pad(emb_e_img.astype(f32), pad)
    else:
        wr = emb_e_real.astype(f32)
        wi = emb_e_img.astype(f32)

    grid = (n_pad // tile,)

    act_spec = pl.BlockSpec((B, D), lambda j: (0, 0))
    wt_spec = pl.BlockSpec((tile, D), lambda j: (j, 0))   # row-major, contiguous DMA
    out_spec = pl.BlockSpec((B, tile), lambda j: (0, j))  # lane-dense output

    # VMEM budget: double-buffered weight tiles dominate; leave headroom
    # (v7x has only 64 MiB per TC).
    elt = 4  # f32
    needed = (2 * 2 * tile * D * elt          # two weight tables, double-buffered
              + 2 * 2 * B * D * elt           # two activation blocks
              + 2 * B * tile * elt)           # output block
    vmem_limit = min(max(2 * needed, 16 << 20), 48 << 20)

    cost = pl.CostEstimate(
        flops=2 * 2 * B * D * n_pad,          # two matmuls
        transcendentals=B * n_pad,            # sigmoid
        bytes_accessed=2 * n_pad * D * elt + 2 * B * D * elt + B * n_pad * elt,
    )

    out = pl.pallas_call(
        complex_kernel,
        out_shape=jax.ShapeDtypeStruct((B, n_pad), jnp.float32),
        grid_spec=pltpu.PrefetchScalarGridSpec(
            num_scalar_prefetch=0,
            grid=grid,
            in_specs=[act_spec, act_spec, wt_spec, wt_spec],
            out_specs=out_spec,
        ),
        compiler_params=pltpu.CompilerParams(
            dimension_semantics=("parallel",),
            vmem_limit_bytes=vmem_limit,
        ),
        cost_estimate=cost,
    )(act_a, act_b, wr, wi)

    return out[:, :N] if n_pad != N else out


def make_params(key, num_entities, num_relations, embedding_dim):
    """Deterministic xavier-normal-style init; row 0 zeroed (padding_idx=0)."""
    def xavier_normal(k, shape):
        fan_in, fan_out = shape[1], shape[0]
        std = (2.0 / (fan_in + fan_out)) ** 0.5
        w = jax.random.normal(k, shape, dtype=jnp.float32) * std
        return w.at[0].set(0.0)  # padding_idx=0

    k1, k2, k3, k4 = jax.random.split(key, 4)
    emb_e_real = xavier_normal(k1, (num_entities, embedding_dim))
    emb_e_img = xavier_normal(k2, (num_entities, embedding_dim))
    emb_rel_real = xavier_normal(k3, (num_relations, embedding_dim))
    emb_rel_img = xavier_normal(k4, (num_relations, embedding_dim))
    return emb_e_real, emb_e_img, emb_rel_real, emb_rel_img


def _reference(e1, rel, emb_e_real, emb_e_img, emb_rel_real, emb_rel_img):
    e1r = emb_e_real[e1]; e1i = emb_e_img[e1]
    rr = emb_rel_real[rel]; ri = emb_rel_img[rel]
    return jax.nn.sigmoid(
        (e1r * rr) @ emb_e_real.T + (e1r * ri) @ emb_e_img.T
        + (e1i * rr) @ emb_e_img.T - (e1i * ri) @ emb_e_real.T)


if __name__ == "__main__":
    key = jax.random.PRNGKey(0)
    pkey, ekey, rkey, pkey2 = jax.random.split(key, 4)

    # Case 1: N a multiple of the (clamped) tile.
    num_entities, num_relations, embedding_dim, batch = 256, 32, 32, 8
    params = make_params(pkey, num_entities, num_relations, embedding_dim)
    e1 = jax.random.randint(ekey, (batch,), 0, num_entities, dtype=jnp.int32)
    rel = jax.random.randint(rkey, (batch,), 0, num_relations, dtype=jnp.int32)

    pred = complex_forward(e1, rel, *params)
    pred = jax.block_until_ready(pred)
    ref = _reference(e1, rel, *params)
    assert pred.shape == (batch, num_entities)
    assert jnp.max(jnp.abs(pred - ref)) < 1e-5

    # Case 2: ragged N (exercises the padded tail tile path).
    num_entities2 = 200
    params2 = make_params(pkey2, num_entities2, num_relations, embedding_dim)
    e1b = jnp.clip(e1, 0, num_entities2 - 1)
    pred2 = complex_forward(e1b, rel, *params2, tile_n=128)
    pred2 = jax.block_until_ready(pred2)
    ref2 = _reference(e1b, rel, *params2)
    assert pred2.shape == (batch, num_entities2)
    assert jnp.max(jnp.abs(pred2 - ref2)) < 1e-5

    print("KERNEL_OK")
</pallas_src>

<mosaic_0001>
module attributes {stable_mosaic.version = 11 : i64} {
  func.func @complex_kernel(%arg0: i32, %arg1: memref<8x32xf32, #tpu.memory_space<vmem>>, %arg2: memref<8x32xf32, #tpu.memory_space<vmem>>, %arg3: memref<256x32xf32, #tpu.memory_space<vmem>>, %arg4: memref<256x32xf32, #tpu.memory_space<vmem>>, %arg5: memref<8x256xf32, #tpu.memory_space<vmem>>) attributes {dimension_semantics = [#tpu.dimension_semantics<parallel>], iteration_bounds = array<i64: 1>, scalar_prefetch = 0 : i64, scratch_operands = 0 : i64, tpu.core_type = #tpu.core_type<tc>, window_params = [{pipeline_mode = #tpu.pipeline_mode<synchronous>, transform_indices = @transform_0, window_bounds = array<i64: 8, 32>}, {pipeline_mode = #tpu.pipeline_mode<synchronous>, transform_indices = @transform_1, window_bounds = array<i64: 8, 32>}, {transform_indices = @transform_2, window_bounds = array<i64: 256, 32>}, {transform_indices = @transform_3, window_bounds = array<i64: 256, 32>}, {transform_indices = @transform_4, window_bounds = array<i64: 8, 256>}]} {
    %c0 = arith.constant 0 : index
    %c0_0 = arith.constant 0 : index
    %0 = vector.load %arg1[%c0, %c0_0] : memref<8x32xf32, #tpu.memory_space<vmem>>, vector<8x32xf32>
    %c0_1 = arith.constant 0 : index
    %c0_2 = arith.constant 0 : index
    %1 = vector.load %arg3[%c0_1, %c0_2] : memref<256x32xf32, #tpu.memory_space<vmem>>, vector<256x32xf32>
    %cst = arith.constant dense<0.000000e+00> : vector<8x256xf32>
    %2 = tpu.matmul %0, %1, %cst {dimension_numbers = #tpu.dot_dimension_numbers<[1], [1], [0], [0], [0, 0, 1, 0], [], []>} : vector<8x32xf32>, vector<256x32xf32>, vector<8x256xf32> -> vector<8x256xf32>
    %c0_3 = arith.constant 0 : index
    %c0_4 = arith.constant 0 : index
    %3 = vector.load %arg2[%c0_3, %c0_4] : memref<8x32xf32, #tpu.memory_space<vmem>>, vector<8x32xf32>
    %c0_5 = arith.constant 0 : index
    %c0_6 = arith.constant 0 : index
    %4 = vector.load %arg4[%c0_5, %c0_6] : memref<256x32xf32, #tpu.memory_space<vmem>>, vector<256x32xf32>
    %cst_7 = arith.constant dense<0.000000e+00> : vector<8x256xf32>
    %5 = tpu.matmul %3, %4, %cst_7 {dimension_numbers = #tpu.dot_dimension_numbers<[1], [1], [0], [0], [0, 0, 1, 0], [], []>} : vector<8x32xf32>, vector<256x32xf32>, vector<8x256xf32> -> vector<8x256xf32>
    %6 = arith.addf %2, %5 : vector<8x256xf32>
    %7 = arith.negf %6 : vector<8x256xf32>
    %8 = math.exp %7 : vector<8x256xf32>
    %cst_8 = arith.constant 1.000000e+00 : f32
    %9 = vector.broadcast %cst_8 : f32 to vector<8x256xf32>
    %10 = arith.addf %9, %8 : vector<8x256xf32>
    %11 = arith.divf %9, %10 : vector<8x256xf32>
    %c0_9 = arith.constant 0 : index
    %c0_10 = arith.constant 0 : index
    %12 = vector.load %arg5[%c0_9, %c0_10] : memref<8x256xf32, #tpu.memory_space<vmem>>, vector<8x256xf32>
    tpu.vector_store %arg5[%c0_9, %c0_10], %11 {strides = array<i32>} : memref<8x256xf32, #tpu.memory_space<vmem>>, vector<8x256xf32>,
    return
  }
  func.func @transform_0(%arg0: i32) -> (i32, i32) {
    %c0_i32 = arith.constant 0 : i32
    %c0_i32_0 = arith.constant 0 : i32
    %c0_i32_1 = arith.constant 0 : i32
    return %c0_i32, %c0_i32_0 : i32, i32
  }
  func.func @transform_1(%arg0: i32) -> (i32, i32) {
    %c0_i32 = arith.constant 0 : i32
    %c0_i32_0 = arith.constant 0 : i32
    %c0_i32_1 = arith.constant 0 : i32
    return %c0_i32, %c0_i32_0 : i32, i32
  }
  func.func @transform_2(%arg0: i32) -> (i32, i32) {
    %c0_i32 = arith.constant 0 : i32
    %c0_i32_0 = arith.constant 0 : i32
    return %arg0, %c0_i32 : i32, i32
  }
  func.func @transform_3(%arg0: i32) -> (i32, i32) {
    %c0_i32 = arith.constant 0 : i32
    %c0_i32_0 = arith.constant 0 : i32
    return %arg0, %c0_i32 : i32, i32
  }
  func.func @transform_4(%arg0: i32) -> (i32, i32) {
    %c0_i32 = arith.constant 0 : i32
    %c0_i32_0 = arith.constant 0 : i32
    return %c0_i32, %arg0 : i32, i32
  }
}

</mosaic_0001>

<llo_original>
// kernel: complex_forward.1
$region0: #{complex_forward.1}
  #allocation0 [shape = 'u32[]', space=smem, size = 0x4, offset = 0x4, fixed_abs, tag = 'smem constant byte address 0x4 - core index']
  #allocation1 [shape = 'u32[144,128]{1,0:T(1,128)}', space=vmem, size = 0x12000, scoped, tag = 'internal scratch']
  %s0 = inlined_call_operand.vmem [shape: f32[8,32], index: 0, kind: input, shape index: {}]
  %s1 = inlined_call_operand.vmem [shape: f32[8,32], index: 1, kind: input, shape index: {}]
  %s2 = inlined_call_operand.vmem [shape: f32[256,32], index: 2, kind: input, shape index: {}]
  %s3 = inlined_call_operand.vmem [shape: f32[256,32], index: 3, kind: input, shape index: {}]
  %s4 = inlined_call_operand.hbm [shape: f32[8,256], index: 4, kind: output, shape index: {}]
  %s5 = sld [smem:[#allocation0]]
  $region26: #{complex_forward.1} parent=0
    _
  %s7 = ssub.s32 1, %s5
  %s8 = scalar_select 0, %s7, %s5
  $region1: #{complex_forward.1} parent=0
    #allocation2 [shape = 'u8[8192]{0}', space=vmem, size = 0x2000, scoped, tag = 'output window, operand 0, single buffered']
    #allocation3 [shape = 's32[1]{0}', space=sflag, size = 0x4, scoped, tag = 'scoped memory for complex_forward.1']
    %9 = vsyncpa [#allocation3], 0
    // Predicated region
    $region2: #{complex_forward.1} parent=1 // pred_check
      _
    $region3: #{complex_forward.1} parent=1 // pred_check_branch
      %11 = sbr.rel (0) target = $region5
    $region4: #{complex_forward.1} parent=1 // pred_region
      _
    $region5: #{complex_forward.1} parent=1 // pred_fallthru
      _
    // Predicated region
    $region6: #{complex_forward.1} parent=1 // pred_check
      _
    $region7: #{complex_forward.1} parent=1 // pred_check_branch
      %13 = sbr.rel (0) target = $region9
    $region8: #{complex_forward.1} parent=1 // pred_region
      _
    $region9: #{complex_forward.1} parent=1 // pred_fallthru
      _
    // Predicated region
    $region10: #{complex_forward.1} parent=1 // pred_check
      _
    $region11: #{complex_forward.1} parent=1 // pred_check_branch
      %15 = sbr.rel (0) target = $region13
    $region12: #{complex_forward.1} parent=1 // pred_region
      _
    $region13: #{complex_forward.1} parent=1 // pred_fallthru
      _
    // Predicated region
    $region14: #{complex_forward.1} parent=1 // pred_check
      _
    $region15: #{complex_forward.1} parent=1 // pred_check_branch
      %17 = sbr.rel (0) target = $region17
    $region16: #{complex_forward.1} parent=1 // pred_region
      _
    $region17: #{complex_forward.1} parent=1 // pred_fallthru
      _
    %v18 = vld [vmem:[%s0] sm:$0xff]
    %v19 = vld [vmem:[%s2] sm:$0xff]
    %v20 = vld [vmem:[%s2 + $0x8] sm:$0xff]
    %v21 = vld [vmem:[%s2 + $0x10] sm:$0xff]
    %v22 = vld [vmem:[%s2 + $0x18] sm:$0xff]
    %v23 = vld [vmem:[%s2 + $0x20] sm:$0xff]
    %v24 = vld [vmem:[%s2 + $0x28] sm:$0xff]
    %v25 = vld [vmem:[%s2 + $0x30] sm:$0xff]
    %v26 = vld [vmem:[%s2 + $0x38] sm:$0xff]
    %v27 = vld [vmem:[%s2 + $0x40] sm:$0xff]
    %v28 = vld [vmem:[%s2 + $0x48] sm:$0xff]
    %v29 = vld [vmem:[%s2 + $0x50] sm:$0xff]
    %v30 = vld [vmem:[%s2 + $0x58] sm:$0xff]
    %v31 = vld [vmem:[%s2 + $0x60] sm:$0xff]
    %v32 = vld [vmem:[%s2 + $0x68] sm:$0xff]
    %v33 = vld [vmem:[%s2 + $0x70] sm:$0xff]
    %v34 = vld [vmem:[%s2 + $0x78] sm:$0xff]
    %v35 = vld [vmem:[%s2 + $0x80] sm:$0xff]
    %v36 = vld [vmem:[%s2 + $0x88] sm:$0xff]
    %v37 = vld [vmem:[%s2 + $0x90] sm:$0xff]
    %v38 = vld [vmem:[%s2 + $0x98] sm:$0xff]
    %v39 = vld [vmem:[%s2 + $0xa0] sm:$0xff]
    %v40 = vld [vmem:[%s2 + $0xa8] sm:$0xff]
    %v41 = vld [vmem:[%s2 + $0xb0] sm:$0xff]
    %v42 = vld [vmem:[%s2 + $0xb8] sm:$0xff]
    %v43 = vld [vmem:[%s2 + $0xc0] sm:$0xff]
    %v44 = vld [vmem:[%s2 + $0xc8] sm:$0xff]
    %v45 = vld [vmem:[%s2 + $0xd0] sm:$0xff]
    %v46 = vld [vmem:[%s2 + $0xd8] sm:$0xff]
    %v47 = vld [vmem:[%s2 + $0xe0] sm:$0xff]
    %v48 = vld [vmem:[%s2 + $0xe8] sm:$0xff]
    %v49 = vld [vmem:[%s2 + $0xf0] sm:$0xff]
    %v50 = vld [vmem:[%s2 + $0xf8] sm:$0xff]
    %v51 = vld [vmem:[%s1] sm:$0xff]
    %v52 = vld [vmem:[%s3] sm:$0xff]
    %v53 = vld [vmem:[%s3 + $0x8] sm:$0xff]
    %v54 = vld [vmem:[%s3 + $0x10] sm:$0xff]
    %v55 = vld [vmem:[%s3 + $0x18] sm:$0xff]
    %v56 = vld [vmem:[%s3 + $0x20] sm:$0xff]
    %v57 = vld [vmem:[%s3 + $0x28] sm:$0xff]
    %v58 = vld [vmem:[%s3 + $0x30] sm:$0xff]
    %v59 = vld [vmem:[%s3 + $0x38] sm:$0xff]
    %v60 = vld [vmem:[%s3 + $0x40] sm:$0xff]
    %v61 = vld [vmem:[%s3 + $0x48] sm:$0xff]
    %v62 = vld [vmem:[%s3 + $0x50] sm:$0xff]
    %v63 = vld [vmem:[%s3 + $0x58] sm:$0xff]
    %v64 = vld [vmem:[%s3 + $0x60] sm:$0xff]
    %v65 = vld [vmem:[%s3 + $0x68] sm:$0xff]
    %v66 = vld [vmem:[%s3 + $0x70] sm:$0xff]
    %v67 = vld [vmem:[%s3 + $0x78] sm:$0xff]
    %v68 = vld [vmem:[%s3 + $0x80] sm:$0xff]
    %v69 = vld [vmem:[%s3 + $0x88] sm:$0xff]
    %v70 = vld [vmem:[%s3 + $0x90] sm:$0xff]
    %v71 = vld [vmem:[%s3 + $0x98] sm:$0xff]
    %v72 = vld [vmem:[%s3 + $0xa0] sm:$0xff]
    %v73 = vld [vmem:[%s3 + $0xa8] sm:$0xff]
    %v74 = vld [vmem:[%s3 + $0xb0] sm:$0xff]
    %v75 = vld [vmem:[%s3 + $0xb8] sm:$0xff]
    %v76 = vld [vmem:[%s3 + $0xc0] sm:$0xff]
    %v77 = vld [vmem:[%s3 + $0xc8] sm:$0xff]
    %v78 = vld [vmem:[%s3 + $0xd0] sm:$0xff]
    %v79 = vld [vmem:[%s3 + $0xd8] sm:$0xff]
    %v80 = vld [vmem:[%s3 + $0xe0] sm:$0xff]
    %v81 = vld [vmem:[%s3 + $0xe8] sm:$0xff]
    %v82 = vld [vmem:[%s3 + $0xf0] sm:$0xff]
    %v83 = vld [vmem:[%s3 + $0xf8] sm:$0xff]
    %vm84 = vcmask 261120
    %v86 = vsel %vm84, %v51, 0
    %v89 = vsel %vm84, %v52, 0
    %v92 = vsel %vm84, %v53, 0
    %v95 = vsel %vm84, %v54, 0
    %v98 = vsel %vm84, %v55, 0
    %v101 = vsel %vm84, %v56, 0
    %v104 = vsel %vm84, %v57, 0
    %v107 = vsel %vm84, %v58, 0
    %v110 = vsel %vm84, %v59, 0
    %v113 = vsel %vm84, %v60, 0
    %v116 = vsel %vm84, %v61, 0
    %v119 = vsel %vm84, %v62, 0
    %v122 = vsel %vm84, %v63, 0
    %v125 = vsel %vm84, %v64, 0
    %v128 = vsel %vm84, %v65, 0
    %v131 = vsel %vm84, %v66, 0
    %v134 = vsel %vm84, %v67, 0
    %v137 = vsel %vm84, %v68, 0
    %v140 = vsel %vm84, %v69, 0
    %v143 = vsel %vm84, %v70, 0
    %v146 = vsel %vm84, %v71, 0
    %v149 = vsel %vm84, %v72, 0
    %v152 = vsel %vm84, %v73, 0
    %v155 = vsel %vm84, %v74, 0
    %v158 = vsel %vm84, %v75, 0
    %v161 = vsel %vm84, %v76, 0
    %v164 = vsel %vm84, %v77, 0
    %v167 = vsel %vm84, %v78, 0
    %v170 = vsel %vm84, %v79, 0
    %v173 = vsel %vm84, %v80, 0
    %v176 = vsel %vm84, %v81, 0
    %v179 = vsel %vm84, %v82, 0
    %v182 = vsel %vm84, %v83, 0
    %184 = vmatprep.subr.mxu0 0.0
    %185 = vmatpush1.xpose.msra.mxu0 %v89
    %186 = vmatprep.subr.mxu0 0.0
    %187 = vmatpush1.xpose.msra.mxu0 %v92
    %188 = vmatprep.subr.mxu0 0.0
    %189 = vmatpush1.xpose.msra.mxu0 %v95
    %190 = vmatprep.subr.mxu0 0.0
    %191 = vmatpush1.xpose.msra.mxu0 %v98
    %192 = vmatprep.subr.mxu0 0.0
    %193 = vmatpush1.xpose.msra.mxu0 %v101
    %194 = vmatprep.subr.mxu0 0.0
    %195 = vmatpush1.xpose.msra.mxu0 %v104
    %196 = vmatprep.subr.mxu0 0.0
    %197 = vmatpush1.xpose.msra.mxu0 %v107
    %198 = vmatprep.subr.mxu0 0.0
    %199 = vmatpush1.xpose.msra.mxu0 %v110
    %200 = vmatprep.subr.mxu0 0.0
    %201 = vmatpush1.xpose.msra.mxu0 %v113
    %202 = vmatprep.subr.mxu0 0.0
    %203 = vmatpush1.xpose.msra.mxu0 %v116
    %204 = vmatprep.subr.mxu0 0.0
    %205 = vmatpush1.xpose.msra.mxu0 %v119
    %206 = vmatprep.subr.mxu0 0.0
    %207 = vmatpush1.xpose.msra.mxu0 %v122
    %208 = vmatprep.subr.mxu0 0.0
    %209 = vmatpush1.xpose.msra.mxu0 %v125
    %210 = vmatprep.subr.mxu0 0.0
    %211 = vmatpush1.xpose.msra.mxu0 %v128
    %212 = vmatprep.subr.mxu0 0.0
    %213 = vmatpush1.xpose.msra.mxu0 %v131
    %214 = vmatprep.subr.mxu0 0.0
    %215 = vmatpush1.xpose.msra.mxu0 %v134
    %216 = vmatprep.subr.mxu0 0.0
    %217 = vmatpush1.xpose.msra.mxu0 %v137
    %218 = vmatprep.subr.mxu0 0.0
    %219 = vmatpush1.xpose.msra.mxu0 %v140
    %220 = vmatprep.subr.mxu0 0.0
    %221 = vmatpush1.xpose.msra.mxu0 %v143
    %222 = vmatprep.subr.mxu0 0.0
    %223 = vmatpush1.xpose.msra.mxu0 %v146
    %224 = vmatprep.subr.mxu0 0.0
    %225 = vmatpush1.xpose.msra.mxu0 %v149
    %226 = vmatprep.subr.mxu0 0.0
    %227 = vmatpush1.xpose.msra.mxu0 %v152
    %228 = vmatprep.subr.mxu0 0.0
    %229 = vmatpush1.xpose.msra.mxu0 %v155
    %230 = vmatprep.subr.mxu0 0.0
    %231 = vmatpush1.xpose.msra.mxu0 %v158
    %232 = vmatprep.subr.mxu0 0.0
    %233 = vmatpush1.xpose.msra.mxu0 %v161
    %234 = vmatprep.subr.mxu0 0.0
    %235 = vmatpush1.xpose.msra.mxu0 %v164
    %236 = vmatprep.subr.mxu0 0.0
    %237 = vmatpush1.xpose.msra.mxu0 %v167
    %238 = vmatprep.subr.mxu0 0.0
    %239 = vmatpush1.xpose.msra.mxu0 %v170
    %240 = vmatprep.subr.mxu0 0.0
    %241 = vmatpush1.xpose.msra.mxu0 %v173
    %242 = vmatprep.subr.mxu0 0.0
    %243 = vmatpush1.xpose.msra.mxu0 %v176
    %244 = vmatprep.subr.mxu0 0.0
    %245 = vmatpush1.xpose.msra.mxu0 %v179
    %246 = vmatprep.subr.mxu0 0.0
    %247 = vmatpush1.xpose.msra.mxu0 %v182
    %248 = vmatprep.mubr.f32.mxu0 0.0
    %249 = vmatmul.mubr.f32.gmra.mrb[0].mxu0 %v86
    %v250 = vpop.f32.mrb[0].mxu0
    %v251 = vadd.f32 0.0, %v250
    %v252 = vpop.f32.mrb[0].mxu0
    %v253 = vadd.f32 0.0, %v252
    %254 = vdwg.mxu0
    %v256 = vsel %vm84, %v18, 0
    %v259 = vsel %vm84, %v19, 0
    %v262 = vsel %vm84, %v20, 0
    %v265 = vsel %vm84, %v21, 0
    %v268 = vsel %vm84, %v22, 0
    %v271 = vsel %vm84, %v23, 0
    %v274 = vsel %vm84, %v24, 0
    %v277 = vsel %vm84, %v25, 0
    %v280 = vsel %vm84, %v26, 0
    %v283 = vsel %vm84, %v27, 0
    %v286 = vsel %vm84, %v28, 0
    %v289 = vsel %vm84, %v29, 0
    %v292 = vsel %vm84, %v30, 0
    %v295 = vsel %vm84, %v31, 0
    %v298 = vsel %vm84, %v32, 0
    %v301 = vsel %vm84, %v33, 0
    %v304 = vsel %vm84, %v34, 0
    %v307 = vsel %vm84, %v35, 0
    %v310 = vsel %vm84, %v36, 0
    %v313 = vsel %vm84, %v37, 0
    %v316 = vsel %vm84, %v38, 0
    %v319 = vsel %vm84, %v39, 0
    %v322 = vsel %vm84, %v40, 0
    %v325 = vsel %vm84, %v41, 0
    %v328 = vsel %vm84, %v42, 0
    %v331 = vsel %vm84, %v43, 0
    %v334 = vsel %vm84, %v44, 0
    %v337 = vsel %vm84, %v45, 0
    %v340 = vsel %vm84, %v46, 0
    %v343 = vsel %vm84, %v47, 0
    %v346 = vsel %vm84, %v48, 0
    %v349 = vsel %vm84, %v49, 0
    %v352 = vsel %vm84, %v50, 0
    %354 = vmatprep.subr.mxu0 0.0
    %355 = vmatpush1.xpose.msra.mxu0 %v259
    %356 = vmatprep.subr.mxu0 0.0
    %357 = vmatpush1.xpose.msra.mxu0 %v262
    %358 = vmatprep.subr.mxu0 0.0
    %359 = vmatpush1.xpose.msra.mxu0 %v265
    %360 = vmatprep.subr.mxu0 0.0
    %361 = vmatpush1.xpose.msra.mxu0 %v268
    %362 = vmatprep.subr.mxu0 0.0
    %363 = vmatpush1.xpose.msra.mxu0 %v271
    %364 = vmatprep.subr.mxu0 0.0
    %365 = vmatpush1.xpose.msra.mxu0 %v274
    %366 = vmatprep.subr.mxu0 0.0
    %367 = vmatpush1.xpose.msra.mxu0 %v277
    %368 = vmatprep.subr.mxu0 0.0
    %369 = vmatpush1.xpose.msra.mxu0 %v280
    %370 = vmatprep.subr.mxu0 0.0
    %371 = vmatpush1.xpose.msra.mxu0 %v283
    %372 = vmatprep.subr.mxu0 0.0
    %373 = vmatpush1.xpose.msra.mxu0 %v286
    %374 = vmatprep.subr.mxu0 0.0
    %375 = vmatpush1.xpose.msra.mxu0 %v289
    %376 = vmatprep.subr.mxu0 0.0
    %377 = vmatpush1.xpose.msra.mxu0 %v292
    %378 = vmatprep.subr.mxu0 0.0
    %379 = vmatpush1.xpose.msra.mxu0 %v295
    %380 = vmatprep.subr.mxu0 0.0
    %381 = vmatpush1.xpose.msra.mxu0 %v298
    %382 = vmatprep.subr.mxu0 0.0
    %383 = vmatpush1.xpose.msra.mxu0 %v301
    %384 = vmatprep.subr.mxu0 0.0
    %385 = vmatpush1.xpose.msra.mxu0 %v304
    %386 = vmatprep.subr.mxu0 0.0
    %387 = vmatpush1.xpose.msra.mxu0 %v307
    %388 = vmatprep.subr.mxu0 0.0
    %389 = vmatpush1.xpose.msra.mxu0 %v310
    %390 = vmatprep.subr.mxu0 0.0
    %391 = vmatpush1.xpose.msra.mxu0 %v313
    %392 = vmatprep.subr.mxu0 0.0
    %393 = vmatpush1.xpose.msra.mxu0 %v316
    %394 = vmatprep.subr.mxu0 0.0
    %395 = vmatpush1.xpose.msra.mxu0 %v319
    %396 = vmatprep.subr.mxu0 0.0
    %397 = vmatpush1.xpose.msra.mxu0 %v322
    %398 = vmatprep.subr.mxu0 0.0
    %399 = vmatpush1.xpose.msra.mxu0 %v325
    %400 = vmatprep.subr.mxu0 0.0
    %401 = vmatpush1.xpose.msra.mxu0 %v328
    %402 = vmatprep.subr.mxu0 0.0
    %403 = vmatpush1.xpose.msra.mxu0 %v331
    %404 = vmatprep.subr.mxu0 0.0
    %405 = vmatpush1.xpose.msra.mxu0 %v334
    %406 = vmatprep.subr.mxu0 0.0
    %407 = vmatpush1.xpose.msra.mxu0 %v337
    %408 = vmatprep.subr.mxu0 0.0
    %409 = vmatpush1.xpose.msra.mxu0 %v340
    %410 = vmatprep.subr.mxu0 0.0
    %411 = vmatpush1.xpose.msra.mxu0 %v343
    %412 = vmatprep.subr.mxu0 0.0
    %413 = vmatpush1.xpose.msra.mxu0 %v346
    %414 = vmatprep.subr.mxu0 0.0
    %415 = vmatpush1.xpose.msra.mxu0 %v349
    %416 = vmatprep.subr.mxu0 0.0
    %417 = vmatpush1.xpose.msra.mxu0 %v352
    %418 = vmatprep.mubr.f32.mxu0 0.0
    %419 = vmatmul.mubr.f32.gmra.mrb[0].mxu0 %v256
    %v420 = vpop.f32.mrb[0].mxu0
    %v421 = vadd.f32 %v251, %v420
    %v422 = vpop.f32.mrb[0].mxu0
    %v423 = vadd.f32 %v253, %v422
    %424 = vdwg.mxu0
    %v425 = vxor.u32 %v421, 2147483648
    %v426 = vxor.u32 %v423, 2147483648
    %v427 = vmul.f32 %v425, 1.442695
    %v428 = vpow.pop %v427
    %v429 = vmul.f32 %v426, 1.442695
    %v430 = vpow.pop %v429
    %v431 = vadd.f32 %v428, 1.0
    %v432 = vadd.f32 %v430, 1.0
    %v433 = vrcp.pop %v431
    %v434 = vmul.f32 1.0, %v433
    %v435 = vrcp.pop %v432
    %v436 = vmul.f32 1.0, %v435
    %437 = vst [vmem:[#allocation2] sm:$0xff] %v434
    %438 = vst [vmem:[#allocation2 + $0x8] sm:$0xff] %v436
    // Predicated region
    $region18: #{complex_forward.1} parent=1 // pred_check
      _
    $region19: #{complex_forward.1} parent=1 // pred_check_branch
      %440 = sbr.rel (0) target = $region21
    $region20: #{complex_forward.1} parent=1 // pred_region
      %s442 = ssub.s32 256, 256
      %443 = vsyncadd [#allocation3], %s442
      %s445 = sshll.u32 [#allocation2], 4
      %s446 = int_to_ptr.vmem [resolvable:$true] %s445
      %448 = dma.vmem_to_hbm [thread:$0]  %s446, 256, %s4, [#allocation3]
    $region21: #{complex_forward.1} parent=1 // pred_fallthru
      _
    // Predicated region
    $region22: #{complex_forward.1} parent=1 // pred_check
      _
    $region23: #{complex_forward.1} parent=1 // pred_check_branch
      %450 = sbr.rel (0) target = $region25
    $region24: #{complex_forward.1} parent=1 // pred_region
      %451 = dma.done [#allocation3], 256
    $region25: #{complex_forward.1} parent=1 // pred_fallthru
      _
    %452 = vsyncpa [#allocation3], 1

</llo_original>
